<compile_context>
chip_gen: v7x
topology: tpu7x:2x2x1
jax: 0.10.0
libtpu: 0.0.40
codegen_flags: <defaults>
</compile_context>

<pallas_src>
from functools import partial

import jax
import jax.numpy as jnp
from jax.experimental import pallas as pl
from jax.experimental.pallas import tpu as pltpu


def _round_up(x: int, m: int) -> int:
    return ((x + m - 1) // m) * m


def _make_actor_critic_kernel(temperature: float, action_dim: int, ap_pad: int,
                              with_logits: bool):
    inv_temp = 1.0 / float(temperature)

    def kernel(state_ref, w1_ref, b1_ref, w23_ref, b23_ref, out_ref):
        x = state_ref[...]                                        # [TB, S]

        # shared = ReLU(x @ W1 + b1)
        h = jnp.dot(x, w1_ref[...], preferred_element_type=jnp.float32)
        h = jnp.maximum(h + b1_ref[...], 0.0)                     # [TB, H_PAD]

        # fused heads: lanes 0..A-1 = actor logits, lane A = critic value,
        # lanes A+1.. = zero padding
        head = jnp.dot(h, w23_ref[...], preferred_element_type=jnp.float32)
        head = head + b23_ref[...]                                # [TB, AP_PAD]

        clipped = jnp.clip(head * inv_temp, -10.0, 10.0)

        lane = jax.lax.broadcasted_iota(jnp.int32, clipped.shape, 1)
        is_action = lane < action_dim

        # softmax over valid action lanes only (padded lanes -> exp(-inf) = 0)
        masked = jnp.where(is_action, clipped, -jnp.inf)
        m = jnp.max(masked, axis=-1, keepdims=True)
        e = jnp.exp(masked - m)
        denom = jnp.sum(e, axis=-1, keepdims=True)
        policy = e / denom                                        # exact normalization

        # block0 = policy with the raw critic value inserted at lane A
        block0 = policy + jnp.where(lane == action_dim, head, 0.0)

        if with_logits:
            out_ref[:, 0:ap_pad] = block0                         # lane-dense stores
            out_ref[:, ap_pad:2 * ap_pad] = clipped
        else:
            out_ref[...] = block0

    return kernel


def prepare_params(params):
    """One-time weight prep: fuse actor/critic heads and pad to 128 lanes.
    Call only when the weights change, NOT per forward step."""
    f32 = jnp.float32
    S, H = params["W1"].shape
    A = params["W2"].shape[1]
    H_PAD = _round_up(H, 128)
    AP_PAD = _round_up(A + 1, 128)

    w1 = jnp.zeros((S, H_PAD), f32).at[:, :H].set(params["W1"].astype(f32))
    b1 = jnp.zeros((1, H_PAD), f32).at[0, :H].set(params["b1"].astype(f32))

    w23 = jnp.concatenate([params["W2"], params["W3"]], axis=1).astype(f32)   # [H, A+1]
    b23 = jnp.concatenate([params["b2"], params["b3"]], axis=0).astype(f32)   # [A+1]
    w23_p = jnp.zeros((H_PAD, AP_PAD), f32).at[:H, :A + 1].set(w23)
    b23_p = jnp.zeros((1, AP_PAD), f32).at[0, :A + 1].set(b23)

    prepped = {"W1p": w1, "b1p": b1, "W23p": w23_p, "b23p": b23_p}
    return prepped, int(A)


@partial(jax.jit, static_argnames=("action_dim", "temperature", "return_logits"))
def actor_critic_forward(state, prepped, action_dim, temperature=5.0,
                         return_logits=False):
    """state: [B, state_dim] float32.  prepped: output of prepare_params()."""
    f32 = jnp.float32
    B, S = state.shape
    H_PAD = prepped["W1p"].shape[1]
    AP_PAD = prepped["W23p"].shape[1]
    A = action_dim
    OUT_W = 2 * AP_PAD if return_logits else AP_PAD

    state = state.astype(f32)

    # Pad batch only to a sublane multiple (<= 7 extra rows). Partial last
    # tiles are handled by Pallas block masking; no pad to a tile multiple.
    B_eff = _round_up(max(B, 1), 8)
    if B_eff != B:
        state = jnp.zeros((B_eff, S), f32).at[:B].set(state)

    # Batch tiling: large tiles amortize per-grid-step overhead, but keep at
    # least 2 grid steps when possible so v7x's two TensorCores both get work.
    TB_TARGET = 512
    if B_eff <= 2 * TB_TARGET:
        TB = max(8, _round_up(pl.cdiv(B_eff, 2), 8))
    else:
        TB = TB_TARGET
    grid = (pl.cdiv(B_eff, TB),)

    const2d = lambda shape: pl.BlockSpec(shape, lambda i: (0, 0))

    cost = pl.CostEstimate(
        flops=2 * B_eff * (S * H_PAD + H_PAD * AP_PAD),
        transcendentals=B_eff * AP_PAD,
        bytes_accessed=4 * (B_eff * S + S * H_PAD + H_PAD
                            + H_PAD * AP_PAD + AP_PAD + B_eff * OUT_W),
    )

    out = pl.pallas_call(
        _make_actor_critic_kernel(temperature, A, AP_PAD, return_logits),
        out_shape=jax.ShapeDtypeStruct((B_eff, OUT_W), f32),
        grid=grid,
        in_specs=[
            pl.BlockSpec((TB, S), lambda i: (i, 0)),       # state (tiled over batch)
            const2d((S, H_PAD)),                           # W1 (resident)
            const2d((1, H_PAD)),                           # b1
            const2d((H_PAD, AP_PAD)),                      # fused W2|W3
            const2d((1, AP_PAD)),                          # fused b2|b3
        ],
        out_specs=pl.BlockSpec((TB, OUT_W), lambda i: (i, 0)),
        compiler_params=pltpu.CompilerParams(
            dimension_semantics=("parallel",),
            vmem_limit_bytes=32 * 1024 * 1024,             # safe on v7x's 64 MiB
        ),
        cost_estimate=cost,
    )(state, prepped["W1p"], prepped["b1p"], prepped["W23p"], prepped["b23p"])

    # single slice of the head slab, then split
    head_slab = out[:B, :A + 1]
    policy = head_slab[:, :A]
    value = head_slab[:, A:A + 1]
    if return_logits:
        clipped = out[:B, AP_PAD:AP_PAD + A]
        return policy, value, clipped
    return policy, value


def xavier_uniform(key, fan_in, fan_out, dtype=jnp.float32):
    # matches torch.nn.init.xavier_uniform_ (gain=1.0)
    limit = (6.0 / (fan_in + fan_out)) ** 0.5
    return jax.random.uniform(key, (fan_in, fan_out), dtype, -limit, limit)


def init_params(key, state_dim, action_dim, hidden_dim):
    k1, k2, k3 = jax.random.split(key, 3)
    return {
        "W1": xavier_uniform(k1, state_dim, hidden_dim),
        "b1": jnp.zeros((hidden_dim,), jnp.float32),
        "W2": xavier_uniform(k2, hidden_dim, action_dim),
        "b2": jnp.zeros((action_dim,), jnp.float32),
        "W3": xavier_uniform(k3, hidden_dim, 1),
        "b3": jnp.zeros((1,), jnp.float32),
    }


def _reference(state, params, temperature):
    h = jnp.maximum(state @ params["W1"] + params["b1"], 0.0)
    logits = h @ params["W2"] + params["b2"]
    clipped = jnp.clip(logits / temperature, -10.0, 10.0)
    policy = jax.nn.softmax(clipped, axis=-1)
    value = h @ params["W3"] + params["b3"]
    return policy, value, clipped


if __name__ == "__main__":
    key = jax.random.PRNGKey(0)
    k_state1, k_state2, k_params = jax.random.split(key, 3)

    STATE_DIM, ACTION_DIM, HIDDEN_DIM = 16, 8, 32
    TEMPERATURE = 5.0

    params = init_params(k_params, STATE_DIM, ACTION_DIM, HIDDEN_DIM)
    prepped, action_dim = prepare_params(params)   # one-time, outside hot path

    # --- case 1: return_logits=True, batch divides tiles exactly -------------
    B1 = 8
    state1 = jax.random.normal(k_state1, (B1, STATE_DIM), dtype=jnp.float32)
    policy, value, clipped = actor_critic_forward(
        state1, prepped, action_dim, temperature=TEMPERATURE, return_logits=True)
    jax.block_until_ready((policy, value, clipped))

    ref_policy, ref_value, ref_clipped = _reference(state1, params, TEMPERATURE)
    assert jnp.allclose(policy, ref_policy, atol=1e-4), "policy mismatch"
    assert jnp.allclose(value, ref_value, atol=5e-5), "value mismatch"
    assert jnp.allclose(clipped, ref_clipped, atol=5e-5), "logits mismatch"
    assert jnp.allclose(jnp.sum(policy, axis=-1), 1.0, atol=1e-4)

    # --- case 2: return_logits=False (narrow output), odd batch (partial tile)
    B2 = 20
    state2 = jax.random.normal(k_state2, (B2, STATE_DIM), dtype=jnp.float32)
    policy2, value2 = actor_critic_forward(
        state2, prepped, action_dim, temperature=TEMPERATURE, return_logits=False)
    jax.block_until_ready((policy2, value2))

    ref_policy2, ref_value2, _ = _reference(state2, params, TEMPERATURE)
    assert jnp.allclose(policy2, ref_policy2, atol=1e-4), "policy mismatch (no-logits)"
    assert jnp.allclose(value2, ref_value2, atol=5e-5), "value mismatch (no-logits)"

    print("KERNEL_OK")
</pallas_src>

<mosaic_0001>
module attributes {stable_mosaic.version = 11 : i64} {
  func.func @kernel(%arg0: i32, %arg1: memref<8x16xf32, #tpu.memory_space<vmem>>, %arg2: memref<16x128xf32, #tpu.memory_space<vmem>>, %arg3: memref<1x128xf32, #tpu.memory_space<vmem>>, %arg4: memref<128x128xf32, #tpu.memory_space<vmem>>, %arg5: memref<1x128xf32, #tpu.memory_space<vmem>>, %arg6: memref<8x256xf32, #tpu.memory_space<vmem>>) attributes {dimension_semantics = [#tpu.dimension_semantics<parallel>], iteration_bounds = array<i64: 1>, scalar_prefetch = 0 : i64, scratch_operands = 0 : i64, tpu.core_type = #tpu.core_type<tc>, window_params = [{transform_indices = @transform_0, window_bounds = array<i64: 8, 16>}, {pipeline_mode = #tpu.pipeline_mode<synchronous>, transform_indices = @transform_1, window_bounds = array<i64: 16, 128>}, {pipeline_mode = #tpu.pipeline_mode<synchronous>, transform_indices = @transform_2, window_bounds = array<i64: 1, 128>}, {pipeline_mode = #tpu.pipeline_mode<synchronous>, transform_indices = @transform_3, window_bounds = array<i64: 128, 128>}, {pipeline_mode = #tpu.pipeline_mode<synchronous>, transform_indices = @transform_4, window_bounds = array<i64: 1, 128>}, {transform_indices = @transform_5, window_bounds = array<i64: 8, 256>}]} {
    %c0 = arith.constant 0 : index
    %c0_0 = arith.constant 0 : index
    %0 = vector.load %arg1[%c0, %c0_0] : memref<8x16xf32, #tpu.memory_space<vmem>>, vector<8x16xf32>
    %c0_1 = arith.constant 0 : index
    %c0_2 = arith.constant 0 : index
    %1 = vector.load %arg2[%c0_1, %c0_2] : memref<16x128xf32, #tpu.memory_space<vmem>>, vector<16x128xf32>
    %cst = arith.constant dense<0.000000e+00> : vector<8x128xf32>
    %2 = tpu.matmul %0, %1, %cst {dimension_numbers = #tpu.dot_dimension_numbers<[1], [0], [0], [1], [0, 0, 1, 1], [], []>} : vector<8x16xf32>, vector<16x128xf32>, vector<8x128xf32> -> vector<8x128xf32>
    %c0_3 = arith.constant 0 : index
    %c0_4 = arith.constant 0 : index
    %3 = vector.load %arg3[%c0_3, %c0_4] : memref<1x128xf32, #tpu.memory_space<vmem>>, vector<1x128xf32>
    %4 = vector.broadcast %3 : vector<1x128xf32> to vector<8x128xf32>
    %5 = arith.addf %2, %4 : vector<8x128xf32>
    %cst_5 = arith.constant 0.000000e+00 : f32
    %6 = vector.broadcast %cst_5 : f32 to vector<8x128xf32>
    %7 = arith.maximumf %5, %6 : vector<8x128xf32>
    %c0_6 = arith.constant 0 : index
    %c0_7 = arith.constant 0 : index
    %8 = vector.load %arg4[%c0_6, %c0_7] : memref<128x128xf32, #tpu.memory_space<vmem>>, vector<128x128xf32>
    %cst_8 = arith.constant dense<0.000000e+00> : vector<8x128xf32>
    %9 = tpu.matmul %7, %8, %cst_8 {dimension_numbers = #tpu.dot_dimension_numbers<[1], [0], [0], [1], [0, 0, 1, 1], [], []>} : vector<8x128xf32>, vector<128x128xf32>, vector<8x128xf32> -> vector<8x128xf32>
    %c0_9 = arith.constant 0 : index
    %c0_10 = arith.constant 0 : index
    %10 = vector.load %arg5[%c0_9, %c0_10] : memref<1x128xf32, #tpu.memory_space<vmem>>, vector<1x128xf32>
    %11 = vector.broadcast %10 : vector<1x128xf32> to vector<8x128xf32>
    %12 = arith.addf %9, %11 : vector<8x128xf32>
    %cst_11 = arith.constant 2.000000e-01 : f32
    %13 = vector.broadcast %cst_11 : f32 to vector<8x128xf32>
    %14 = arith.mulf %12, %13 : vector<8x128xf32>
    %cst_12 = arith.constant -1.000000e+01 : f32
    %cst_13 = arith.constant 1.000000e+01 : f32
    %15 = vector.broadcast %cst_12 : f32 to vector<8x128xf32>
    %16 = arith.maximumf %15, %14 : vector<8x128xf32>
    %17 = vector.broadcast %cst_13 : f32 to vector<8x128xf32>
    %18 = arith.minimumf %17, %16 : vector<8x128xf32>
    %19 = tpu.iota {dimensions = array<i32: 1>} : vector<8x128xi32>
    %c8_i32 = arith.constant 8 : i32
    %20 = vector.broadcast %c8_i32 : i32 to vector<8x128xi32>
    %21 = arith.cmpi slt, %19, %20 : vector<8x128xi32>
    %cst_14 = arith.constant 0xFF800000 : f32
    %22 = vector.broadcast %cst_14 : f32 to vector<8x128xf32>
    %23 = arith.select %21, %18, %22 : vector<8x128xi1>, vector<8x128xf32>
    %cst_15 = arith.constant dense<0xFF800000> : vector<8xf32>
    %24 = vector.multi_reduction <maximumf>, %23, %cst_15 [1] : vector<8x128xf32> to vector<8xf32>
    %25 = vector.shape_cast %24 : vector<8xf32> to vector<8x1xf32>
    %26 = vector.broadcast %25 : vector<8x1xf32> to vector<8x128xf32>
    %27 = arith.subf %23, %26 : vector<8x128xf32>
    %28 = math.exp %27 : vector<8x128xf32>
    %cst_16 = arith.constant dense<0.000000e+00> : vector<8xf32>
    %29 = vector.multi_reduction <add>, %28, %cst_16 [1] : vector<8x128xf32> to vector<8xf32>
    %30 = vector.shape_cast %29 : vector<8xf32> to vector<8x1xf32>
    %31 = vector.broadcast %30 : vector<8x1xf32> to vector<8x128xf32>
    %32 = arith.divf %28, %31 : vector<8x128xf32>
    %c8_i32_17 = arith.constant 8 : i32
    %33 = vector.broadcast %c8_i32_17 : i32 to vector<8x128xi32>
    %34 = arith.cmpi eq, %19, %33 : vector<8x128xi32>
    %cst_18 = arith.constant 0.000000e+00 : f32
    %35 = vector.broadcast %cst_18 : f32 to vector<8x128xf32>
    %36 = arith.select %34, %12, %35 : vector<8x128xi1>, vector<8x128xf32>
    %37 = arith.addf %32, %36 : vector<8x128xf32>
    %c0_19 = arith.constant 0 : index
    %c0_20 = arith.constant 0 : index
    %38 = vector.load %arg6[%c0_19, %c0_20] : memref<8x256xf32, #tpu.memory_space<vmem>>, vector<8x128xf32>
    tpu.vector_store %arg6[%c0_19, %c0_20], %37 {strides = array<i32>} : memref<8x256xf32, #tpu.memory_space<vmem>>, vector<8x128xf32>,
    %c0_21 = arith.constant 0 : index
    %c128 = arith.constant 128 : index
    %39 = vector.load %arg6[%c0_21, %c128] : memref<8x256xf32, #tpu.memory_space<vmem>>, vector<8x128xf32>
    tpu.vector_store %arg6[%c0_21, %c128], %18 {strides = array<i32>} : memref<8x256xf32, #tpu.memory_space<vmem>>, vector<8x128xf32>,
    return
  }
  func.func @transform_0(%arg0: i32) -> (i32, i32) {
    %c0_i32 = arith.constant 0 : i32
    %c0_i32_0 = arith.constant 0 : i32
    return %arg0, %c0_i32 : i32, i32
  }
  func.func @transform_1(%arg0: i32) -> (i32, i32) {
    %c0_i32 = arith.constant 0 : i32
    %c0_i32_0 = arith.constant 0 : i32
    %c0_i32_1 = arith.constant 0 : i32
    return %c0_i32, %c0_i32_0 : i32, i32
  }
  func.func @transform_2(%arg0: i32) -> (i32, i32) {
    %c0_i32 = arith.constant 0 : i32
    %c0_i32_0 = arith.constant 0 : i32
    %c0_i32_1 = arith.constant 0 : i32
    return %c0_i32, %c0_i32_0 : i32, i32
  }
  func.func @transform_3(%arg0: i32) -> (i32, i32) {
    %c0_i32 = arith.constant 0 : i32
    %c0_i32_0 = arith.constant 0 : i32
    %c0_i32_1 = arith.constant 0 : i32
    return %c0_i32, %c0_i32_0 : i32, i32
  }
  func.func @transform_4(%arg0: i32) -> (i32, i32) {
    %c0_i32 = arith.constant 0 : i32
    %c0_i32_0 = arith.constant 0 : i32
    %c0_i32_1 = arith.constant 0 : i32
    return %c0_i32, %c0_i32_0 : i32, i32
  }
  func.func @transform_5(%arg0: i32) -> (i32, i32) {
    %c0_i32 = arith.constant 0 : i32
    %c0_i32_0 = arith.constant 0 : i32
    return %arg0, %c0_i32 : i32, i32
  }
}

</mosaic_0001>

<llo_original>
// kernel: actor_critic_forward.1
$region0: #{actor_critic_forward.1}
  #allocation0 [shape = 'u32[]', space=smem, size = 0x4, offset = 0x4, fixed_abs, tag = 'smem constant byte address 0x4 - core index']
  #allocation1 [shape = 'u32[144,128]{1,0:T(1,128)}', space=vmem, size = 0x12000, scoped, tag = 'internal scratch']
  %s0 = inlined_call_operand.hbm [shape: f32[8,16], index: 0, kind: input, shape index: {}]
  %s1 = inlined_call_operand.hbm [shape: f32[16,128], index: 1, kind: input, shape index: {}]
  %s2 = inlined_call_operand.vmem [shape: f32[1,128], index: 2, kind: input, shape index: {}]
  %s3 = inlined_call_operand.hbm [shape: f32[128,128], index: 3, kind: input, shape index: {}]
  %s4 = inlined_call_operand.vmem [shape: f32[1,128], index: 4, kind: input, shape index: {}]
  %s5 = inlined_call_operand.vmem [shape: f32[8,256], index: 5, kind: output, shape index: {}]
  %s6 = sld [smem:[#allocation0]]
  $region42: #{actor_critic_forward.1} parent=0
    _
  %s8 = ssub.s32 1, %s6
  %s9 = scalar_select 0, %s8, %s6
  $region1: #{actor_critic_forward.1} parent=0
    #allocation2 [shape = 'u8[4096]{0}', space=vmem, size = 0x1000, scoped, tag = 'input window, operand 0, single buffered']
    #allocation3 [shape = 's32[1]{0}', space=sflag, size = 0x4, scoped, tag = 'scoped memory for actor_critic_forward.1']
    #allocation4 [shape = 'u8[8192]{0}', space=vmem, size = 0x2000, scoped, tag = 'input window, operand 1, single buffered']
    #allocation5 [shape = 's32[1]{0}', space=sflag, size = 0x4, scoped, tag = 'scoped memory for actor_critic_forward.1']
    #allocation6 [shape = 'u8[65536]{0}', space=vmem, size = 0x10000, scoped, tag = 'input window, operand 3, single buffered']
    %10 = vsyncpa [#allocation3], 0
    %11 = vsyncpa [#allocation5], 0
    // Predicated region
    $region2: #{actor_critic_forward.1} parent=1 // pred_check
      _
    $region3: #{actor_critic_forward.1} parent=1 // pred_check_branch
      %13 = sbr.rel (0) target = $region5
    $region4: #{actor_critic_forward.1} parent=1 // pred_region
      %s15 = ssub.s32 128, 128
      %16 = vsyncadd [#allocation3], %s15
      %s18 = sshll.u32 [#allocation2], 4
      %s19 = int_to_ptr.vmem [resolvable:$true] %s18
      %21 = dma.hbm_to_vmem [thread:$0]  %s0, 128, %s19, [#allocation3]
    $region5: #{actor_critic_forward.1} parent=1 // pred_fallthru
      _
    // Predicated region
    $region6: #{actor_critic_forward.1} parent=1 // pred_check
      _
    $region7: #{actor_critic_forward.1} parent=1 // pred_check_branch
      %23 = sbr.rel (0) target = $region9
    $region8: #{actor_critic_forward.1} parent=1 // pred_region
      %s25 = ssub.s32 256, 256
      %26 = vsyncadd [#allocation5], %s25
      %s27 = sshll.u32 [#allocation4], 4
      %s28 = int_to_ptr.vmem [resolvable:$true] %s27
      %33 = dma.hbm_to_vmem [thread:$0]  %s1, 256, %s28, [#allocation5], 128, 128, 8
    $region9: #{actor_critic_forward.1} parent=1 // pred_fallthru
      _
    // Predicated region
    $region10: #{actor_critic_forward.1} parent=1 // pred_check
      _
    $region11: #{actor_critic_forward.1} parent=1 // pred_check_branch
      %35 = sbr.rel (0) target = $region13
    $region12: #{actor_critic_forward.1} parent=1 // pred_region
      _
    $region13: #{actor_critic_forward.1} parent=1 // pred_fallthru
      _
    // Predicated region
    $region14: #{actor_critic_forward.1} parent=1 // pred_check
      _
    $region15: #{actor_critic_forward.1} parent=1 // pred_check_branch
      %37 = sbr.rel (0) target = $region17
    $region16: #{actor_critic_forward.1} parent=1 // pred_region
      %s39 = ssub.s32 2048, 2048
      %40 = vsyncadd [#allocation5], %s39
      %s41 = sshll.u32 [#allocation6], 4
      %s42 = int_to_ptr.vmem [resolvable:$true] %s41
      %47 = dma.hbm_to_vmem [thread:$0]  %s3, 2048, %s42, [#allocation5], 128, 128, 8
    $region17: #{actor_critic_forward.1} parent=1 // pred_fallthru
      _
    // Predicated region
    $region18: #{actor_critic_forward.1} parent=1 // pred_check
      _
    $region19: #{actor_critic_forward.1} parent=1 // pred_check_branch
      %49 = sbr.rel (0) target = $region21
    $region20: #{actor_critic_forward.1} parent=1 // pred_region
      _
    $region21: #{actor_critic_forward.1} parent=1 // pred_fallthru
      _
    // Predicated region
    $region22: #{actor_critic_forward.1} parent=1 // pred_check
      _
    $region23: #{actor_critic_forward.1} parent=1 // pred_check_branch
      %51 = sbr.rel (0) target = $region25
    $region24: #{actor_critic_forward.1} parent=1 // pred_region
      %52 = dma.done [#allocation3], 128
    $region25: #{actor_critic_forward.1} parent=1 // pred_fallthru
      _
    // Predicated region
    $region26: #{actor_critic_forward.1} parent=1 // pred_check
      _
    $region27: #{actor_critic_forward.1} parent=1 // pred_check_branch
      %54 = sbr.rel (0) target = $region29
    $region28: #{actor_critic_forward.1} parent=1 // pred_region
      %55 = dma.done [#allocation5], 256
    $region29: #{actor_critic_forward.1} parent=1 // pred_fallthru
      _
    // Predicated region
    $region30: #{actor_critic_forward.1} parent=1 // pred_check
      _
    $region31: #{actor_critic_forward.1} parent=1 // pred_check_branch
      %57 = sbr.rel (0) target = $region33
    $region32: #{actor_critic_forward.1} parent=1 // pred_region
      %58 = dma.done [#allocation5], 2048
    $region33: #{actor_critic_forward.1} parent=1 // pred_fallthru
      _
    %v59 = vld [vmem:[#allocation2] sm:$0xff]
    %v60 = vld [vmem:[#allocation4] sm:$0xff]
    %v61 = vld [vmem:[#allocation4 + $0x8] sm:$0xff]
    %v62 = vld [vmem:[%s2] sm:$0x1]
    %v64 = vlaneseq
    %v65 = vshrl.u32 %v64, 7
    %v66 = vsub.s32 0, %v65
    %v67 = vrot.slane %v62, %v66
    %vm69 = vcmask 130048
    %v71 = vsel %vm69, %v59, 0
    %73 = vmatprep.subr.mxu0 0.0
    %74 = vmatpush1.msra.mxu0 %v60
    %75 = vmatprep.subr.mxu0 0.0
    %76 = vmatpush1.msra.mxu0 %v61
    %77 = vmatprep.subr.mxu0 0.0
    %78 = vmatpush1.msra.mxu0 0.0
    %79 = vmatprep.subr.mxu0 0.0
    %80 = vmatpush1.msra.mxu0 0.0
    %81 = vmatprep.subr.mxu0 0.0
    %82 = vmatpush1.msra.mxu0 0.0
    %83 = vmatprep.subr.mxu0 0.0
    %84 = vmatpush1.msra.mxu0 0.0
    %85 = vmatprep.subr.mxu0 0.0
    %86 = vmatpush1.msra.mxu0 0.0
    %87 = vmatprep.subr.mxu0 0.0
    %88 = vmatpush1.msra.mxu0 0.0
    %89 = vmatprep.subr.mxu0 0.0
    %90 = vmatpush1.msra.mxu0 0.0
    %91 = vmatprep.subr.mxu0 0.0
    %92 = vmatpush1.msra.mxu0 0.0
    %93 = vmatprep.subr.mxu0 0.0
    %94 = vmatpush1.msra.mxu0 0.0
    %95 = vmatprep.subr.mxu0 0.0
    %96 = vmatpush1.msra.mxu0 0.0
    %97 = vmatprep.subr.mxu0 0.0
    %98 = vmatpush1.msra.mxu0 0.0
    %99 = vmatprep.subr.mxu0 0.0
    %100 = vmatpush1.msra.mxu0 0.0
    %101 = vmatprep.subr.mxu0 0.0
    %102 = vmatpush1.msra.mxu0 0.0
    %103 = vmatprep.subr.mxu0 0.0
    %104 = vmatpush1.msra.mxu0 0.0
    %105 = vmatprep.subr.mxu0 0.0
    %106 = vmatpush1.msra.mxu0 0.0
    %107 = vmatprep.subr.mxu0 0.0
    %108 = vmatpush1.msra.mxu0 0.0
    %109 = vmatprep.subr.mxu0 0.0
    %110 = vmatpush1.msra.mxu0 0.0
    %111 = vmatprep.subr.mxu0 0.0
    %112 = vmatpush1.msra.mxu0 0.0
    %113 = vmatprep.subr.mxu0 0.0
    %114 = vmatpush1.msra.mxu0 0.0
    %115 = vmatprep.subr.mxu0 0.0
    %116 = vmatpush1.msra.mxu0 0.0
    %117 = vmatprep.subr.mxu0 0.0
    %118 = vmatpush1.msra.mxu0 0.0
    %119 = vmatprep.subr.mxu0 0.0
    %120 = vmatpush1.msra.mxu0 0.0
    %121 = vmatprep.subr.mxu0 0.0
    %122 = vmatpush1.msra.mxu0 0.0
    %123 = vmatprep.subr.mxu0 0.0
    %124 = vmatpush1.msra.mxu0 0.0
    %125 = vmatprep.subr.mxu0 0.0
    %126 = vmatpush1.msra.mxu0 0.0
    %127 = vmatprep.subr.mxu0 0.0
    %128 = vmatpush1.msra.mxu0 0.0
    %129 = vmatprep.subr.mxu0 0.0
    %130 = vmatpush1.msra.mxu0 0.0
    %131 = vmatprep.subr.mxu0 0.0
    %132 = vmatpush1.msra.mxu0 0.0
    %133 = vmatprep.subr.mxu0 0.0
    %134 = vmatpush1.msra.mxu0 0.0
    %135 = vmatprep.subr.mxu0 0.0
    %136 = vmatpush1.msra.mxu0 0.0
    %137 = vmatprep.mubr.f32.mxu0 0.0
    %138 = vmatmul.mubr.f32.gmra.mrb[0].mxu0 %v71
    %v139 = vpop.f32.mrb[0].mxu0
    %v140 = vadd.f32 %v67, %v139
    %v141 = vpop.f32.mrb[0].mxu0
    %142 = vdwg.mxu0
    %v143 = vmax.f32 %v140, 0.0
    %v144 = vld [vmem:[#allocation6] sm:$0xff]
    %v145 = vld [vmem:[#allocation6 + $0x8] sm:$0xff]
    %v146 = vld [vmem:[#allocation6 + $0x10] sm:$0xff]
    %v147 = vld [vmem:[#allocation6 + $0x18] sm:$0xff]
    %v148 = vld [vmem:[#allocation6 + $0x20] sm:$0xff]
    %v149 = vld [vmem:[#allocation6 + $0x28] sm:$0xff]
    %v150 = vld [vmem:[#allocation6 + $0x30] sm:$0xff]
    %v151 = vld [vmem:[#allocation6 + $0x38] sm:$0xff]
    %v152 = vld [vmem:[#allocation6 + $0x40] sm:$0xff]
    %v153 = vld [vmem:[#allocation6 + $0x48] sm:$0xff]
    %v154 = vld [vmem:[#allocation6 + $0x50] sm:$0xff]
    %v155 = vld [vmem:[#allocation6 + $0x58] sm:$0xff]
    %v156 = vld [vmem:[#allocation6 + $0x60] sm:$0xff]
    %v157 = vld [vmem:[#allocation6 + $0x68] sm:$0xff]
    %v158 = vld [vmem:[#allocation6 + $0x70] sm:$0xff]
    %v159 = vld [vmem:[#allocation6 + $0x78] sm:$0xff]
    %v160 = vld [vmem:[%s4] sm:$0x1]
    %v162 = vlaneseq
    %v163 = vshrl.u32 %v162, 7
    %v164 = vsub.s32 0, %v163
    %v165 = vrot.slane %v160, %v164
    %167 = vmatprep.subr.mxu0 0.0
    %168 = vmatpush1.msra.mxu0 %v144
    %169 = vmatprep.subr.mxu0 0.0
    %170 = vmatpush1.msra.mxu0 %v145
    %171 = vmatprep.subr.mxu0 0.0
    %172 = vmatpush1.msra.mxu0 %v146
    %173 = vmatprep.subr.mxu0 0.0
    %174 = vmatpush1.msra.mxu0 %v147
    %175 = vmatprep.subr.mxu0 0.0
    %176 = vmatpush1.msra.mxu0 %v148
    %177 = vmatprep.subr.mxu0 0.0
    %178 = vmatpush1.msra.mxu0 %v149
    %179 = vmatprep.subr.mxu0 0.0
    %180 = vmatpush1.msra.mxu0 %v150
    %181 = vmatprep.subr.mxu0 0.0
    %182 = vmatpush1.msra.mxu0 %v151
    %183 = vmatprep.subr.mxu0 0.0
    %184 = vmatpush1.msra.mxu0 %v152
    %185 = vmatprep.subr.mxu0 0.0
    %186 = vmatpush1.msra.mxu0 %v153
    %187 = vmatprep.subr.mxu0 0.0
    %188 = vmatpush1.msra.mxu0 %v154
    %189 = vmatprep.subr.mxu0 0.0
    %190 = vmatpush1.msra.mxu0 %v155
    %191 = vmatprep.subr.mxu0 0.0
    %192 = vmatpush1.msra.mxu0 %v156
    %193 = vmatprep.subr.mxu0 0.0
    %194 = vmatpush1.msra.mxu0 %v157
    %195 = vmatprep.subr.mxu0 0.0
    %196 = vmatpush1.msra.mxu0 %v158
    %197 = vmatprep.subr.mxu0 0.0
    %198 = vmatpush1.msra.mxu0 %v159
    %199 = vmatprep.subr.mxu0 0.0
    %200 = vmatpush1.msra.mxu0 0.0
    %201 = vmatprep.subr.mxu0 0.0
    %202 = vmatpush1.msra.mxu0 0.0
    %203 = vmatprep.subr.mxu0 0.0
    %204 = vmatpush1.msra.mxu0 0.0
    %205 = vmatprep.subr.mxu0 0.0
    %206 = vmatpush1.msra.mxu0 0.0
    %207 = vmatprep.subr.mxu0 0.0
    %208 = vmatpush1.msra.mxu0 0.0
    %209 = vmatprep.subr.mxu0 0.0
    %210 = vmatpush1.msra.mxu0 0.0
    %211 = vmatprep.subr.mxu0 0.0
    %212 = vmatpush1.msra.mxu0 0.0
    %213 = vmatprep.subr.mxu0 0.0
    %214 = vmatpush1.msra.mxu0 0.0
    %215 = vmatprep.subr.mxu0 0.0
    %216 = vmatpush1.msra.mxu0 0.0
    %217 = vmatprep.subr.mxu0 0.0
    %218 = vmatpush1.msra.mxu0 0.0
    %219 = vmatprep.subr.mxu0 0.0
    %220 = vmatpush1.msra.mxu0 0.0
    %221 = vmatprep.subr.mxu0 0.0
    %222 = vmatpush1.msra.mxu0 0.0
    %223 = vmatprep.subr.mxu0 0.0
    %224 = vmatpush1.msra.mxu0 0.0
    %225 = vmatprep.subr.mxu0 0.0
    %226 = vmatpush1.msra.mxu0 0.0
    %227 = vmatprep.subr.mxu0 0.0
    %228 = vmatpush1.msra.mxu0 0.0
    %229 = vmatprep.subr.mxu0 0.0
    %230 = vmatpush1.msra.mxu0 0.0
    %231 = vmatprep.mubr.f32.mxu0 0.0
    %232 = vmatmul.mubr.f32.gmra.mrb[0].mxu0 %v143
    %v233 = vpop.f32.mrb[0].mxu0
    %v234 = vadd.f32 %v165, %v233
    %v235 = vpop.f32.mrb[0].mxu0
    %236 = vdwg.mxu0
    %v237 = vmul.f32 %v234, 0.2
    %v238 = vmax.f32 %v237, -10.0
    %v239 = vmin.f32 %v238, 10.0
    %v240 = vlaneseq
    %v241 = vand.u32 %v240, 127
    %vm242 = vcmp.lt.s32.totalorder %v241, 8
    %v243 = vsel %vm242, %v239, -inf
    %244 = vmax.xlane.f32.xlu0 %v243
    %v245 = vpop.xlane.xlu0 %244
    %v246 = vsub.f32 %v243, %v245
    %v247 = vmul.f32 %v246, 1.442695
    %v248 = vpow.pop %v247
    %249 = vadd.xlane.f32.xlu0 %v248
    %v250 = vpop.xlane.xlu0 %249
    %v251 = vrcp.pop %v250
    %v252 = vmul.f32 %v248, %v251
    %vm253 = vcmp.eq.s32.totalorder %v241, 8
    %v254 = vsel %vm253, %v234, 0.0
    %v255 = vadd.f32 %v252, %v254
    %256 = vst [vmem:[%s5] sm:$0xff] %v255
    %257 = vst [vmem:[%s5 + $0x8] sm:$0xff] %v239
    // Predicated region
    $region34: #{actor_critic_forward.1} parent=1 // pred_check
      _
    $region35: #{actor_critic_forward.1} parent=1 // pred_check_branch
      %259 = sbr.rel (0) target = $region37
    $region36: #{actor_critic_forward.1} parent=1 // pred_region
      _
    $region37: #{actor_critic_forward.1} parent=1 // pred_fallthru
      _
    // Predicated region
    $region38: #{actor_critic_forward.1} parent=1 // pred_check
      _
    $region39: #{actor_critic_forward.1} parent=1 // pred_check_branch
      %261 = sbr.rel (0) target = $region41
    $region40: #{actor_critic_forward.1} parent=1 // pred_region
      _
    $region41: #{actor_critic_forward.1} parent=1 // pred_fallthru
      _
    %262 = vsyncpa [#allocation3], 1
    %263 = vsyncpa [#allocation5], 1

</llo_original>
